<compile_context>
chip_gen: v6e
topology: v6e:2x2x1
jax: 0.10.0
libtpu: 0.0.40
codegen_flags: <defaults>
</compile_context>

<pallas_src>
import functools

import jax
import jax.numpy as jnp
from jax import lax
from jax.experimental import pallas as pl
from jax.experimental.pallas import tpu as pltpu


# ----------------------------------------------------------------------------
# Fused kernel: one grid point = one batch element.
#   qkv = X @ W_qkv          (single packed projection, all heads)
#   per head: scores -> softmax -> z_h        (static unrolled head loop)
#   out = concat(z_h) @ Wz_t + bias           (single projection, single store)
# ----------------------------------------------------------------------------
def _mhsa_kernel(x_ref, wqkv_ref, wz_ref, bz_ref, out_ref, attn_ref=None,
                 *, num_heads, head_dim):
    H, D = num_heads, head_dim
    HD = H * D
    scale = float(D) ** -0.5          # == (D**-0.25 on q) * (D**-0.25 on k)

    x = x_ref[0]                      # (S, D)
    wqkv = wqkv_ref[...]              # (D, 3*H*D), (in, out) layout

    # One big projection for Q/K/V of all heads.
    qkv = jnp.dot(x, wqkv, preferred_element_type=jnp.float32)   # (S, 3*H*D)
    q_all = qkv[:, 0:HD] * scale
    k_all = qkv[:, HD:2 * HD]
    v_all = qkv[:, 2 * HD:3 * HD]

    z_heads = []
    for h in range(H):                # H is small & static: unrolled at trace time
        sl = slice(h * D, (h + 1) * D)
        q = q_all[:, sl]
        k = k_all[:, sl]
        v = v_all[:, sl]

        # scores = q @ k.T without an in-kernel transpose (contract last dims).
        s = lax.dot_general(q, k, (((1,), (1,)), ((), ())),
                            preferred_element_type=jnp.float32)  # (S, S)
        s = s - jnp.max(s, axis=-1, keepdims=True)
        p = jnp.exp(s)
        # Softmax denominator on the EUP (approximate reciprocal, free slot).
        p = p * pl.reciprocal(jnp.sum(p, axis=-1, keepdims=True), approx=True)

        if attn_ref is not None:
            attn_ref[0, h] = p.astype(attn_ref.dtype)

        z_heads.append(jnp.dot(p, v, preferred_element_type=jnp.float32))

    # concat over heads + output Linear, single lane-dense store of the result.
    z_cat = jnp.concatenate(z_heads, axis=-1)                    # (S, H*D)
    out = jnp.dot(z_cat, wz_ref[...], preferred_element_type=jnp.float32)
    out_ref[0] = (out + bz_ref[...]).astype(out_ref.dtype)


def mh_self_attention(x, wq, wk, wv, wz, bz, *, return_attn=True):
    """Multi-head self-attention forward (matches the PyTorch MH_SelfAttention).

    Args:
      x:  (B, S, D) float32
      wq, wk, wv: (H, D, D) per-head projection weights, nn.Linear (out, in) layout
      wz: (D, H*D) output projection weight, (out, in) layout
      bz: (D,) output projection bias
      return_attn: also return the softmax attention weights per head.
    Returns:
      out: (B, S, D), attn_dict: {'h0': (B, S, S), ...}  (attn_dict only if return_attn)
    """
    B, S, D = x.shape
    H = wq.shape[0]
    HD = H * D

    # --- weight prep (done once, outside the kernel) --------------------------
    def _pack(w):  # (H, D_out, D_in) -> (D_in, H*D_out), i.e. in x out, head-major cols
        return jnp.transpose(w, (2, 0, 1)).reshape(D, HD)

    w_qkv = jnp.concatenate([_pack(wq), _pack(wk), _pack(wv)], axis=1)  # (D, 3*H*D)
    wz_t = wz.T                                                         # (H*D, D)
    bz2 = bz.reshape(1, D)

    out_shapes = [jax.ShapeDtypeStruct((B, S, D), jnp.float32)]
    out_specs = [pl.BlockSpec((1, S, D), lambda b: (b, 0, 0))]
    if return_attn:
        out_shapes.append(jax.ShapeDtypeStruct((B, H, S, S), jnp.float32))
        out_specs.append(pl.BlockSpec((1, H, S, S), lambda b: (b, 0, 0, 0)))

    results = pl.pallas_call(
        functools.partial(_mhsa_kernel, num_heads=H, head_dim=D),
        out_shape=tuple(out_shapes),
        grid_spec=pltpu.PrefetchScalarGridSpec(
            num_scalar_prefetch=0,
            grid=(B,),
            in_specs=[
                pl.BlockSpec((1, S, D), lambda b: (b, 0, 0)),    # X
                pl.BlockSpec((D, 3 * HD), lambda b: (0, 0)),     # packed Wqkv (in x out)
                pl.BlockSpec((HD, D), lambda b: (0, 0)),         # Wz.T (in x out)
                pl.BlockSpec((1, D), lambda b: (0, 0)),          # bias
            ],
            out_specs=out_specs,
        ),
        compiler_params=pltpu.CompilerParams(
            dimension_semantics=("parallel",),                   # shard batch over TCs
            vmem_limit_bytes=32 * 1024 * 1024,
        ),
    )(x, w_qkv, wz_t, bz2)

    out = results[0]
    if not return_attn:
        return out
    attn = results[1]
    attn_dict = {f"h{i}": attn[:, i] for i in range(H)}
    return out, attn_dict


# ----------------------------------------------------------------------------
# Pure-JAX reference for a correctness check.
# ----------------------------------------------------------------------------
def _reference(x, wq, wk, wv, wz, bz):
    B, S, D = x.shape
    H = wq.shape[0]
    scale = float(D) ** (-0.25)
    zs, attns = [], []
    for h in range(H):
        q = x @ wq[h].T * scale
        k = x @ wk[h].T * scale
        v = x @ wv[h].T
        s = jnp.einsum("bqd,bkd->bqk", q, k)
        p = jax.nn.softmax(s, axis=-1)
        zs.append(jnp.einsum("bqk,bkd->bqd", p, v))
        attns.append(p)
    cat = jnp.concatenate(zs, axis=-1)
    out = cat @ wz.T + bz
    return out, attns


if __name__ == "__main__":
    B, S, D, H = 2, 8, 32, 2   # batch, seq, input_size (=embed_size), num heads

    key = jax.random.PRNGKey(0)
    kx, kq, kk, kv, kz, kb = jax.random.split(key, 6)

    x = jax.random.normal(kx, (B, S, D), dtype=jnp.float32)
    wq = jax.random.normal(kq, (H, D, D), dtype=jnp.float32) * 0.1
    wk = jax.random.normal(kk, (H, D, D), dtype=jnp.float32) * 0.1
    wv = jax.random.normal(kv, (H, D, D), dtype=jnp.float32) * 0.1
    wz = jax.random.normal(kz, (D, H * D), dtype=jnp.float32) * 0.1
    bz = jax.random.normal(kb, (D,), dtype=jnp.float32) * 0.1

    out, attn_dict = mh_self_attention(x, wq, wk, wv, wz, bz)
    out = jax.block_until_ready(out)
    attn_dict = jax.tree_util.tree_map(jax.block_until_ready, attn_dict)

    ref_out, ref_attns = _reference(x, wq, wk, wv, wz, bz)
    # Tolerances loosened slightly vs. exact math: softmax denominator uses the
    # EUP approximate reciprocal (pl.reciprocal(..., approx=True)).
    assert jnp.allclose(out, ref_out, atol=1e-2, rtol=1e-2)
    for i in range(H):
        assert jnp.allclose(attn_dict[f"h{i}"], ref_attns[i], atol=1e-2, rtol=1e-2)

    print("KERNEL_OK")
</pallas_src>

<mosaic_0001>
module attributes {stable_mosaic.version = 11 : i64} {
  func.func @_mhsa_kernel(%arg0: i32, %arg1: memref<1x8x32xf32, #tpu.memory_space<vmem>>, %arg2: memref<32x192xf32, #tpu.memory_space<vmem>>, %arg3: memref<64x32xf32, #tpu.memory_space<vmem>>, %arg4: memref<1x32xf32, #tpu.memory_space<vmem>>, %arg5: memref<1x8x32xf32, #tpu.memory_space<vmem>>, %arg6: memref<1x2x8x8xf32, #tpu.memory_space<vmem>>) attributes {dimension_semantics = [#tpu.dimension_semantics<parallel>], iteration_bounds = array<i64: 2>, scalar_prefetch = 0 : i64, scratch_operands = 0 : i64, tpu.core_type = #tpu.core_type<tc>, window_params = [{transform_indices = @transform_0, window_bounds = array<i64: 1, 8, 32>}, {pipeline_mode = #tpu.pipeline_mode<synchronous>, transform_indices = @transform_1, window_bounds = array<i64: 32, 192>}, {pipeline_mode = #tpu.pipeline_mode<synchronous>, transform_indices = @transform_2, window_bounds = array<i64: 64, 32>}, {pipeline_mode = #tpu.pipeline_mode<synchronous>, transform_indices = @transform_3, window_bounds = array<i64: 1, 32>}, {transform_indices = @transform_4, window_bounds = array<i64: 1, 8, 32>}, {transform_indices = @transform_5, window_bounds = array<i64: 1, 2, 8, 8>}]} {
    %c0 = arith.constant 0 : index
    %c0_0 = arith.constant 0 : index
    %c0_1 = arith.constant 0 : index
    %0 = vector.load %arg1[%c0, %c0_0, %c0_1] : memref<1x8x32xf32, #tpu.memory_space<vmem>>, vector<1x8x32xf32>
    %1 = vector.shape_cast %0 : vector<1x8x32xf32> to vector<8x32xf32>
    %c0_2 = arith.constant 0 : index
    %c0_3 = arith.constant 0 : index
    %2 = vector.load %arg2[%c0_2, %c0_3] : memref<32x192xf32, #tpu.memory_space<vmem>>, vector<32x192xf32>
    %cst = arith.constant dense<0.000000e+00> : vector<8x192xf32>
    %3 = tpu.matmul %1, %2, %cst {dimension_numbers = #tpu.dot_dimension_numbers<[1], [0], [0], [1], [0, 0, 1, 1], [], []>} : vector<8x32xf32>, vector<32x192xf32>, vector<8x192xf32> -> vector<8x192xf32>
    %4 = vector.extract_strided_slice %3 {offsets = [0, 0], sizes = [8, 64], strides = [1, 1]} : vector<8x192xf32> to vector<8x64xf32>
    %cst_4 = arith.constant 0.176776692 : f32
    %5 = vector.broadcast %cst_4 : f32 to vector<8x64xf32>
    %6 = arith.mulf %4, %5 : vector<8x64xf32>
    %7 = vector.extract_strided_slice %3 {offsets = [0, 64], sizes = [8, 64], strides = [1, 1]} : vector<8x192xf32> to vector<8x64xf32>
    %8 = vector.extract_strided_slice %3 {offsets = [0, 128], sizes = [8, 64], strides = [1, 1]} : vector<8x192xf32> to vector<8x64xf32>
    %9 = vector.extract_strided_slice %6 {offsets = [0, 0], sizes = [8, 32], strides = [1, 1]} : vector<8x64xf32> to vector<8x32xf32>
    %10 = vector.extract_strided_slice %7 {offsets = [0, 0], sizes = [8, 32], strides = [1, 1]} : vector<8x64xf32> to vector<8x32xf32>
    %11 = vector.extract_strided_slice %8 {offsets = [0, 0], sizes = [8, 32], strides = [1, 1]} : vector<8x64xf32> to vector<8x32xf32>
    %cst_5 = arith.constant dense<0.000000e+00> : vector<8x8xf32>
    %12 = tpu.matmul %9, %10, %cst_5 {dimension_numbers = #tpu.dot_dimension_numbers<[1], [1], [0], [0], [0, 0, 1, 0], [], []>} : vector<8x32xf32>, vector<8x32xf32>, vector<8x8xf32> -> vector<8x8xf32>
    %cst_6 = arith.constant dense<0xFF800000> : vector<8xf32>
    %13 = vector.multi_reduction <maximumf>, %12, %cst_6 [1] : vector<8x8xf32> to vector<8xf32>
    %14 = vector.shape_cast %13 : vector<8xf32> to vector<8x1xf32>
    %15 = vector.broadcast %14 : vector<8x1xf32> to vector<8x8xf32>
    %16 = arith.subf %12, %15 : vector<8x8xf32>
    %17 = math.exp %16 : vector<8x8xf32>
    %cst_7 = arith.constant dense<0.000000e+00> : vector<8xf32>
    %18 = vector.multi_reduction <add>, %17, %cst_7 [1] : vector<8x8xf32> to vector<8xf32>
    %19 = vector.shape_cast %18 : vector<8xf32> to vector<8x1xf32>
    %20 = tpu.reciprocal %19 {approx = true} : vector<8x1xf32> -> vector<8x1xf32>
    %21 = vector.broadcast %20 : vector<8x1xf32> to vector<8x8xf32>
    %22 = arith.mulf %17, %21 : vector<8x8xf32>
    %c0_8 = arith.constant 0 : index
    %c0_9 = arith.constant 0 : index
    %c0_10 = arith.constant 0 : index
    %c0_11 = arith.constant 0 : index
    %23 = vector.load %arg6[%c0_8, %c0_9, %c0_10, %c0_11] : memref<1x2x8x8xf32, #tpu.memory_space<vmem>>, vector<1x1x8x8xf32>
    %24 = vector.shape_cast %23 : vector<1x1x8x8xf32> to vector<8x8xf32>
    %25 = vector.shape_cast %22 : vector<8x8xf32> to vector<1x1x8x8xf32>
    tpu.vector_store %arg6[%c0_8, %c0_9, %c0_10, %c0_11], %25 {strides = array<i32>} : memref<1x2x8x8xf32, #tpu.memory_space<vmem>>, vector<1x1x8x8xf32>,
    %cst_12 = arith.constant dense<0.000000e+00> : vector<8x32xf32>
    %26 = tpu.matmul %22, %11, %cst_12 {dimension_numbers = #tpu.dot_dimension_numbers<[1], [0], [0], [1], [0, 0, 1, 1], [], []>} : vector<8x8xf32>, vector<8x32xf32>, vector<8x32xf32> -> vector<8x32xf32>
    %27 = vector.extract_strided_slice %6 {offsets = [0, 32], sizes = [8, 32], strides = [1, 1]} : vector<8x64xf32> to vector<8x32xf32>
    %28 = vector.extract_strided_slice %7 {offsets = [0, 32], sizes = [8, 32], strides = [1, 1]} : vector<8x64xf32> to vector<8x32xf32>
    %29 = vector.extract_strided_slice %8 {offsets = [0, 32], sizes = [8, 32], strides = [1, 1]} : vector<8x64xf32> to vector<8x32xf32>
    %cst_13 = arith.constant dense<0.000000e+00> : vector<8x8xf32>
    %30 = tpu.matmul %27, %28, %cst_13 {dimension_numbers = #tpu.dot_dimension_numbers<[1], [1], [0], [0], [0, 0, 1, 0], [], []>} : vector<8x32xf32>, vector<8x32xf32>, vector<8x8xf32> -> vector<8x8xf32>
    %cst_14 = arith.constant dense<0xFF800000> : vector<8xf32>
    %31 = vector.multi_reduction <maximumf>, %30, %cst_14 [1] : vector<8x8xf32> to vector<8xf32>
    %32 = vector.shape_cast %31 : vector<8xf32> to vector<8x1xf32>
    %33 = vector.broadcast %32 : vector<8x1xf32> to vector<8x8xf32>
    %34 = arith.subf %30, %33 : vector<8x8xf32>
    %35 = math.exp %34 : vector<8x8xf32>
    %cst_15 = arith.constant dense<0.000000e+00> : vector<8xf32>
    %36 = vector.multi_reduction <add>, %35, %cst_15 [1] : vector<8x8xf32> to vector<8xf32>
    %37 = vector.shape_cast %36 : vector<8xf32> to vector<8x1xf32>
    %38 = tpu.reciprocal %37 {approx = true} : vector<8x1xf32> -> vector<8x1xf32>
    %39 = vector.broadcast %38 : vector<8x1xf32> to vector<8x8xf32>
    %40 = arith.mulf %35, %39 : vector<8x8xf32>
    %c0_16 = arith.constant 0 : index
    %c1 = arith.constant 1 : index
    %c0_17 = arith.constant 0 : index
    %c0_18 = arith.constant 0 : index
    %41 = vector.load %arg6[%c0_16, %c1, %c0_17, %c0_18] : memref<1x2x8x8xf32, #tpu.memory_space<vmem>>, vector<1x1x8x8xf32>
    %42 = vector.shape_cast %41 : vector<1x1x8x8xf32> to vector<8x8xf32>
    %43 = vector.shape_cast %40 : vector<8x8xf32> to vector<1x1x8x8xf32>
    tpu.vector_store %arg6[%c0_16, %c1, %c0_17, %c0_18], %43 {strides = array<i32>} : memref<1x2x8x8xf32, #tpu.memory_space<vmem>>, vector<1x1x8x8xf32>,
    %cst_19 = arith.constant dense<0.000000e+00> : vector<8x32xf32>
    %44 = tpu.matmul %40, %29, %cst_19 {dimension_numbers = #tpu.dot_dimension_numbers<[1], [0], [0], [1], [0, 0, 1, 1], [], []>} : vector<8x8xf32>, vector<8x32xf32>, vector<8x32xf32> -> vector<8x32xf32>
    %45 = tpu.concatenate %26, %44 in 1 : vector<8x32xf32>, vector<8x32xf32> -> vector<8x64xf32>
    %c0_20 = arith.constant 0 : index
    %c0_21 = arith.constant 0 : index
    %46 = vector.load %arg3[%c0_20, %c0_21] : memref<64x32xf32, #tpu.memory_space<vmem>>, vector<64x32xf32>
    %cst_22 = arith.constant dense<0.000000e+00> : vector<8x32xf32>
    %47 = tpu.matmul %45, %46, %cst_22 {dimension_numbers = #tpu.dot_dimension_numbers<[1], [0], [0], [1], [0, 0, 1, 1], [], []>} : vector<8x64xf32>, vector<64x32xf32>, vector<8x32xf32> -> vector<8x32xf32>
    %c0_23 = arith.constant 0 : index
    %c0_24 = arith.constant 0 : index
    %48 = vector.load %arg4[%c0_23, %c0_24] : memref<1x32xf32, #tpu.memory_space<vmem>>, vector<1x32xf32>
    %49 = vector.broadcast %48 : vector<1x32xf32> to vector<8x32xf32>
    %50 = arith.addf %47, %49 : vector<8x32xf32>
    %c0_25 = arith.constant 0 : index
    %c0_26 = arith.constant 0 : index
    %c0_27 = arith.constant 0 : index
    %51 = vector.load %arg5[%c0_25, %c0_26, %c0_27] : memref<1x8x32xf32, #tpu.memory_space<vmem>>, vector<1x8x32xf32>
    %52 = vector.shape_cast %51 : vector<1x8x32xf32> to vector<8x32xf32>
    %53 = vector.shape_cast %50 : vector<8x32xf32> to vector<1x8x32xf32>
    tpu.vector_store %arg5[%c0_25, %c0_26, %c0_27], %53 {strides = array<i32>} : memref<1x8x32xf32, #tpu.memory_space<vmem>>, vector<1x8x32xf32>,
    return
  }
  func.func @transform_0(%arg0: i32) -> (i32, i32, i32) {
    %c0_i32 = arith.constant 0 : i32
    %c0_i32_0 = arith.constant 0 : i32
    %c0_i32_1 = arith.constant 0 : i32
    return %arg0, %c0_i32, %c0_i32_0 : i32, i32, i32
  }
  func.func @transform_1(%arg0: i32) -> (i32, i32) {
    %c0_i32 = arith.constant 0 : i32
    %c0_i32_0 = arith.constant 0 : i32
    %c0_i32_1 = arith.constant 0 : i32
    return %c0_i32, %c0_i32_0 : i32, i32
  }
  func.func @transform_2(%arg0: i32) -> (i32, i32) {
    %c0_i32 = arith.constant 0 : i32
    %c0_i32_0 = arith.constant 0 : i32
    %c0_i32_1 = arith.constant 0 : i32
    return %c0_i32, %c0_i32_0 : i32, i32
  }
  func.func @transform_3(%arg0: i32) -> (i32, i32) {
    %c0_i32 = arith.constant 0 : i32
    %c0_i32_0 = arith.constant 0 : i32
    %c0_i32_1 = arith.constant 0 : i32
    return %c0_i32, %c0_i32_0 : i32, i32
  }
  func.func @transform_4(%arg0: i32) -> (i32, i32, i32) {
    %c0_i32 = arith.constant 0 : i32
    %c0_i32_0 = arith.constant 0 : i32
    %c0_i32_1 = arith.constant 0 : i32
    return %arg0, %c0_i32, %c0_i32_0 : i32, i32, i32
  }
  func.func @transform_5(%arg0: i32) -> (i32, i32, i32, i32) {
    %c0_i32 = arith.constant 0 : i32
    %c0_i32_0 = arith.constant 0 : i32
    %c0_i32_1 = arith.constant 0 : i32
    %c0_i32_2 = arith.constant 0 : i32
    return %arg0, %c0_i32, %c0_i32_0, %c0_i32_1 : i32, i32, i32, i32
  }
}

</mosaic_0001>

<llo_original>
// kernel: tpu_custom_call.1
$region0: #{tpu_custom_call.1}
  #allocation0 [shape = 'u32[]', space=smem, size = 0x4, offset = 0x4, fixed_abs, tag = 'smem constant byte address 0x4 - core index']
  #allocation1 [shape = 'u32[144,128]{1,0:T(1,128)}', space=vmem, size = 0x12000, scoped, tag = 'internal scratch']
  %s0 = inlined_call_operand.vmem [shape: f32[2,8,32], index: 0, kind: input, shape index: {}]
  %s1 = inlined_call_operand.vmem [shape: f32[32,192], index: 1, kind: input, shape index: {}]
  %s2 = inlined_call_operand.vmem [shape: f32[64,32], index: 2, kind: input, shape index: {}]
  %s3 = inlined_call_operand.vmem [shape: f32[1,32], index: 3, kind: input, shape index: {}]
  %s4 = inlined_call_operand.hbm [shape: f32[2,8,32], index: 4, kind: output, shape index: {0}]
  %s5 = inlined_call_operand.hbm [shape: f32[2,2,8,8], index: 5, kind: output, shape index: {1}]
  %6 = xla_tuple %s4, %s5
  %s7 = sld [smem:[#allocation0]]
  $region57: #{tpu_custom_call.1} parent=0
    _
  %s9 = ssub.s32 1, %s7
  %s10 = scalar_select 0, %s9, %s7
  $region1: #{tpu_custom_call.1} parent=0
    #allocation2 [shape = 'u8[8192]{0}', space=vmem, size = 0x2000, scoped, tag = 'output window, operand 0']
    #allocation3 [shape = 's32[2]{0}', space=sflag, size = 0x8, scoped, tag = 'scoped memory for tpu_custom_call.1']
    #allocation4 [shape = 'u8[16384]{0}', space=vmem, size = 0x4000, scoped, tag = 'output window, operand 1']
    #allocation5 [shape = 's32[2]{0}', space=sflag, size = 0x8, scoped, tag = 'scoped memory for tpu_custom_call.1']
    %11 = vsyncpa [#allocation3], 0
    %s12 = scalar_lea.sflag [#allocation3], 1
    %13 = vsyncpa %s12, 0
    %14 = vsyncpa [#allocation5], 0
    %s15 = scalar_lea.sflag [#allocation5], 1
    %16 = vsyncpa %s15, 0
    loop: start=0, step=1, limit=4
    $region2: #{tpu_custom_call.1} parent=1 // loop_pre_header
      _
    $region3: #{tpu_custom_call.1} parent=1 // loop_header
      %s18 = sphi 0, %s22
      %p19 = scmp.ge.s32.totalorder %s18, 4
      %s28 = sphi 0, %s30
      %s31 = sphi 0, %s28
      %s32 = sphi 0, %s31
      %s48 = sphi 0, %s32
      %s52 = sphi 0, %s52
      %s54 = sphi 0, %s52
      %s55 = sphi 0, %s54
      %s69 = sphi 0, %s55
      %s73 = sphi 0, %s73
      %s75 = sphi 0, %s73
      %s76 = sphi 0, %s75
      %s90 = sphi 0, %s76
      %s94 = sphi 0, %s94
      %s96 = sphi 0, %s94
      %s97 = sphi 0, %s96
      %s111 = sphi 0, %s97
      %s117 = sphi 0, %s119
      %s120 = sphi 0, %s117
      %s121 = sphi 0, %s120
      %s137 = sphi 0, %s121
      %s143 = sphi 0, %s145
      %s146 = sphi 0, %s143
      %s147 = sphi 0, %s146
      %s163 = sphi 0, %s147
    $region4: #{tpu_custom_call.1} parent=1 // loop_header_branch
      %21 = sbr.rel (%p19) target = $region8
    $region5: #{tpu_custom_call.1} parent=1 // loop_body
      %s23 = ssub.s32 %s18, 1
      %s24 = ssub.s32 %s18, 2
      %s25 = sadd.s32 %s18, 1
      %s26 = ssub.s32 %s18, %s25
      %p27 = scmp.eq.s32.totalorder %s26, 0
      %s29 = sadd.s32 %s28, 1
      %s30 = scalar_select %p27, %s28, %s29
      %p33 = pneg %p27
      %p34 = scmp.eq.s32.totalorder %s18, 1
      %p35 = por %p33, %p34
      %p36 = scmp.ne.s32.totalorder %s28, %s31
      %p37 = scmp.eq.s32.totalorder %s18, 0
      %p38 = por %p36, %p37
      %p39 = scmp.ne.s32.totalorder %s28, %s31
      %p40 = scmp.eq.s32.totalorder %s23, 1
      %p41 = por %p39, %p40
      %p42 = scmp.ne.s32.totalorder %s31, %s32
      %p43 = scmp.eq.s32.totalorder %s23, 0
      %p44 = por %p42, %p43
      %p45 = scmp.ne.s32.totalorder %s31, %s32
      %p46 = scmp.eq.s32.totalorder %s24, 1
      %p47 = por %p45, %p46
      %p49 = scmp.ne.s32.totalorder %s32, %s48
      %p50 = scmp.eq.s32.totalorder %s24, 0
      %p51 = por %p49, %p50
      %s53 = sadd.s32 %s52, 1
      %p56 = scmp.eq.s32.totalorder %s18, 1
      %p57 = scmp.ne.s32.totalorder %s52, %s54
      %p58 = scmp.eq.s32.totalorder %s18, 0
      %p59 = por %p57, %p58
      %p60 = scmp.ne.s32.totalorder %s52, %s54
      %p61 = scmp.eq.s32.totalorder %s23, 1
      %p62 = por %p60, %p61
      %p63 = scmp.ne.s32.totalorder %s54, %s55
      %p64 = scmp.eq.s32.totalorder %s23, 0
      %p65 = por %p63, %p64
      %p66 = scmp.ne.s32.totalorder %s54, %s55
      %p67 = scmp.eq.s32.totalorder %s24, 1
      %p68 = por %p66, %p67
      %p70 = scmp.ne.s32.totalorder %s55, %s69
      %p71 = scmp.eq.s32.totalorder %s24, 0
      %p72 = por %p70, %p71
      %s74 = sadd.s32 %s73, 1
      %p77 = scmp.eq.s32.totalorder %s18, 1
      %p78 = scmp.ne.s32.totalorder %s73, %s75
      %p79 = scmp.eq.s32.totalorder %s18, 0
      %p80 = por %p78, %p79
      %p81 = scmp.ne.s32.totalorder %s73, %s75
      %p82 = scmp.eq.s32.totalorder %s23, 1
      %p83 = por %p81, %p82
      %p84 = scmp.ne.s32.totalorder %s75, %s76
      %p85 = scmp.eq.s32.totalorder %s23, 0
      %p86 = por %p84, %p85
      %p87 = scmp.ne.s32.totalorder %s75, %s76
      %p88 = scmp.eq.s32.totalorder %s24, 1
      %p89 = por %p87, %p88
      %p91 = scmp.ne.s32.totalorder %s76, %s90
      %p92 = scmp.eq.s32.totalorder %s24, 0
      %p93 = por %p91, %p92
      %s95 = sadd.s32 %s94, 1
      %p98 = scmp.eq.s32.totalorder %s18, 1
      %p99 = scmp.ne.s32.totalorder %s94, %s96
      %p100 = scmp.eq.s32.totalorder %s18, 0
      %p101 = por %p99, %p100
      %p102 = scmp.ne.s32.totalorder %s94, %s96
      %p103 = scmp.eq.s32.totalorder %s23, 1
      %p104 = por %p102, %p103
      %p105 = scmp.ne.s32.totalorder %s96, %s97
      %p106 = scmp.eq.s32.totalorder %s23, 0
      %p107 = por %p105, %p106
      %p108 = scmp.ne.s32.totalorder %s96, %s97
      %p109 = scmp.eq.s32.totalorder %s24, 1
      %p110 = por %p108, %p109
      %p112 = scmp.ne.s32.totalorder %s97, %s111
      %p113 = scmp.eq.s32.totalorder %s24, 0
      %p114 = por %p112, %p113
      %s115 = ssub.s32 %s18, %s25
      %p116 = scmp.eq.s32.totalorder %s115, 0
      %s118 = sadd.s32 %s117, 1
      %s119 = scalar_select %p116, %s117, %s118
      %p122 = pneg %p116
      %p123 = scmp.eq.s32.totalorder %s18, 1
      %p124 = por %p122, %p123
      %p125 = scmp.ne.s32.totalorder %s117, %s120
      %p126 = scmp.eq.s32.totalorder %s18, 0
      %p127 = por %p125, %p126
      %p128 = scmp.ne.s32.totalorder %s117, %s120
      %p129 = scmp.eq.s32.totalorder %s23, 1
      %p130 = por %p128, %p129
      %p131 = scmp.ne.s32.totalorder %s120, %s121
      %p132 = scmp.eq.s32.totalorder %s23, 0
      %p133 = por %p131, %p132
      %p134 = scmp.ne.s32.totalorder %s120, %s121
      %p135 = scmp.eq.s32.totalorder %s24, 1
      %p136 = por %p134, %p135
      %p138 = scmp.ne.s32.totalorder %s121, %s137
      %p139 = scmp.eq.s32.totalorder %s24, 0
      %p140 = por %p138, %p139
      %s141 = ssub.s32 %s18, %s25
      %p142 = scmp.eq.s32.totalorder %s141, 0
      %s144 = sadd.s32 %s143, 1
      %s145 = scalar_select %p142, %s143, %s144
      %p148 = pneg %p142
      %p149 = scmp.eq.s32.totalorder %s18, 1
      %p150 = por %p148, %p149
      %p151 = scmp.ne.s32.totalorder %s143, %s146
      %p152 = scmp.eq.s32.totalorder %s18, 0
      %p153 = por %p151, %p152
      %p154 = scmp.ne.s32.totalorder %s143, %s146
      %p155 = scmp.eq.s32.totalorder %s23, 1
      %p156 = por %p154, %p155
      %p157 = scmp.ne.s32.totalorder %s146, %s147
      %p158 = scmp.eq.s32.totalorder %s23, 0
      %p159 = por %p157, %p158
      %p160 = scmp.ne.s32.totalorder %s146, %s147
      %p161 = scmp.eq.s32.totalorder %s24, 1
      %p162 = por %p160, %p161
      %p164 = scmp.ne.s32.totalorder %s147, %s163
      %p165 = scmp.eq.s32.totalorder %s24, 0
      %p166 = por %p164, %p165
      %p167 = scmp.le.s32.totalorder 1, %s18
      %p168 = scmp.lt.s32.totalorder %s18, 3
      %p169 = pnand %p167, %p168
      %p170 = pneg %p169
      // Predicated region
      $region9: #{tpu_custom_call.1} parent=5 // pred_check
        _
      $region10: #{tpu_custom_call.1} parent=5 // pred_check_branch
        %172 = sbr.rel (%p169) target = $region12
      $region11: #{tpu_custom_call.1} parent=5 // pred_region
        %s173 = ssub.s32 %s18, 1
        // Predicated region
        $region13: #{tpu_custom_call.1} parent=11 // pred_check
          %p174 = pneg %p65
        $region14: #{tpu_custom_call.1} parent=11 // pred_check_branch
          %176 = sbr.rel (%p174) target = $region16
        $region15: #{tpu_custom_call.1} parent=11 // pred_region
          _
        $region16: #{tpu_custom_call.1} parent=11 // pred_fallthru
          _
        // Predicated region
        $region17: #{tpu_custom_call.1} parent=11 // pred_check
          %p177 = pneg %p86
        $region18: #{tpu_custom_call.1} parent=11 // pred_check_branch
          %179 = sbr.rel (%p177) target = $region20
        $region19: #{tpu_custom_call.1} parent=11 // pred_region
          _
        $region20: #{tpu_custom_call.1} parent=11 // pred_fallthru
          _
        // Predicated region
        $region21: #{tpu_custom_call.1} parent=11 // pred_check
          %p180 = pneg %p107
        $region22: #{tpu_custom_call.1} parent=11 // pred_check_branch
          %182 = sbr.rel (%p180) target = $region24
        $region23: #{tpu_custom_call.1} parent=11 // pred_region
          _
        $region24: #{tpu_custom_call.1} parent=11 // pred_fallthru
          _
      $region12: #{tpu_custom_call.1} parent=5 // pred_fallthru
        _
      %p183 = scmp.lt.s32.totalorder %s18, 2
      // Predicated region
      $region25: #{tpu_custom_call.1} parent=5 // pred_check
        %p184 = pneg %p183
      $region26: #{tpu_custom_call.1} parent=5 // pred_check_branch
        %186 = sbr.rel (%p184) target = $region28
      $region27: #{tpu_custom_call.1} parent=5 // pred_region
        // Predicated region
        $region29: #{tpu_custom_call.1} parent=27 // pred_check
          %p187 = pneg %p38
        $region30: #{tpu_custom_call.1} parent=27 // pred_check_branch
          %189 = sbr.rel (%p187) target = $region32
        $region31: #{tpu_custom_call.1} parent=27 // pred_region
          %p190 = scmp.lt.s32.totalorder %s18, 1
          %s191 = scalar_select %p190, %s18, 1
          %s192 = smul.addr %s191, 8
          %s193 = scalar_lea.vmem %s0, %s192
        $region32: #{tpu_custom_call.1} parent=27 // pred_fallthru
          _
      $region28: #{tpu_custom_call.1} parent=5 // pred_fallthru
        _
      %p194 = scmp.le.s32.totalorder 1, %s18
      %p195 = scmp.lt.s32.totalorder %s18, 3
      %p196 = pnand %p194, %p195
      %p197 = pneg %p196
      // Predicated region
      $region33: #{tpu_custom_call.1} parent=5 // pred_check
        _
      $region34: #{tpu_custom_call.1} parent=5 // pred_check_branch
        %199 = sbr.rel (%p196) target = $region36
      $region35: #{tpu_custom_call.1} parent=5 // pred_region
        %s200 = ssub.s32 %s18, 1
        %p201 = scmp.lt.s32.totalorder %s23, 1
        %s202 = scalar_select %p201, %s23, 1
        %s203 = smul.addr %s202, 8
        %s204 = scalar_lea.vmem %s0, %s203
        %p205 = pneg %p44
        %p206 = pneg %p41
        %p207 = pneg %p65
        %p208 = pneg %p62
        %p209 = pneg %p86
        %p210 = pneg %p83
        %p211 = pneg %p107
        %p212 = pneg %p104
        %p213 = pneg %p133
        %p214 = pneg %p130
        %s215 = sand.u32 %s120, 1
        %s216 = scalar_lea.sflag [#allocation3], %s215
        %s217 = sand.u32 %s120, 1
        %s218 = smul.addr %s217, 8
        %s219 = scalar_lea.vmem [#allocation2], %s218
        %p220 = pneg %p159
        %p221 = pneg %p156
        %s222 = sand.u32 %s146, 1
        %s223 = scalar_lea.sflag [#allocation5], %s222
        %s224 = sand.u32 %s146, 1
        %s225 = smul.addr %s224, 16
        %s226 = scalar_lea.vmem [#allocation4], %s225
        %p227 = scmp.lt.s32.totalorder %s23, 1
        %s228 = scalar_select %p227, %s23, 1
        %s229 = smul.addr %s228, 8
        %s230 = scalar_lea.vmem %s0, %s229
        %v231 = vld [vmem:[%s230] sm:$0xff]
        %v232 = vld [vmem:[%s1] sm:$0xff]
        %v233 = vld [vmem:[%s1 + $0x8] sm:$0xff]
        %v234 = vld [vmem:[%s1 + $0x10] sm:$0xff]
        %v235 = vld [vmem:[%s1 + $0x18] sm:$0xff]
        %v236 = vld [vmem:[%s1 + $0x20] sm:$0xff]
        %v237 = vld [vmem:[%s1 + $0x28] sm:$0xff]
        %v238 = vld [vmem:[%s1 + $0x30] sm:$0xff]
        %v239 = vld [vmem:[%s1 + $0x38] sm:$0xff]
        %vm240 = vcmask 261120
        %v242 = vsel %vm240, %v231, 0
        %244 = vmatprep.subr.mxu0 0.0
        %245 = vmatpush1.msra.mxu0 0.0
        %246 = vmatprep.subr.mxu0 0.0
        %247 = vmatpush1.msra.mxu0 0.0
        %248 = vmatprep.subr.mxu0 0.0
        %249 = vmatpush1.msra.mxu0 0.0
        %250 = vmatprep.subr.mxu0 0.0
        %251 = vmatpush1.msra.mxu0 0.0
        %252 = vmatprep.subr.mxu0 0.0
        %253 = vmatpush1.msra.mxu0 0.0
        %254 = vmatprep.subr.mxu0 0.0
        %255 = vmatpush1.msra.mxu0 0.0
        %256 = vmatprep.subr.mxu0 0.0
        %257 = vmatpush1.msra.mxu0 0.0
        %258 = vmatprep.subr.mxu0 0.0
        %259 = vmatpush1.msra.mxu0 0.0
        %260 = vmatprep.subr.mxu0 0.0
        %261 = vmatpush1.msra.mxu0 0.0
        %262 = vmatprep.subr.mxu0 0.0
        %263 = vmatpush1.msra.mxu0 0.0
        %264 = vmatprep.subr.mxu0 0.0
        %265 = vmatpush1.msra.mxu0 0.0
        %266 = vmatprep.subr.mxu0 0.0
        %267 = vmatpush1.msra.mxu0 0.0
        %268 = vmatprep.subr.mxu0 %v239
        %269 = vmatpush1.msra.mxu0 %v238
        %270 = vmatprep.subr.mxu0 %v237
        %271 = vmatpush1.msra.mxu0 %v236
        %272 = vmatprep.subr.mxu0 %v235
        %273 = vmatpush1.msra.mxu0 %v234
        %274 = vmatprep.subr.mxu0 %v233
        %275 = vmatpush1.msra.mxu0 %v232
        %276 = vmatprep.subr.mxu0 0.0
        %277 = vmatpush2.msra.mxu0 0.0
        %278 = vmatprep.subr.mxu0 0.0
        %279 = vmatpush2.msra.mxu0 0.0
        %280 = vmatprep.subr.mxu0 0.0
        %281 = vmatpush2.msra.mxu0 0.0
        %282 = vmatprep.subr.mxu0 0.0
        %283 = vmatpush2.msra.mxu0 0.0
        %284 = vmatprep.subr.mxu0 0.0
        %285 = vmatpush2.msra.mxu0 0.0
        %286 = vmatprep.subr.mxu0 0.0
        %287 = vmatpush2.msra.mxu0 0.0
        %288 = vmatprep.subr.mxu0 0.0
        %289 = vmatpush2.msra.mxu0 0.0
        %290 = vmatprep.subr.mxu0 0.0
        %291 = vmatpush2.msra.mxu0 0.0
        %292 = vmatprep.subr.mxu0 0.0
        %293 = vmatpush2.msra.mxu0 0.0
        %294 = vmatprep.subr.mxu0 0.0
        %295 = vmatpush2.msra.mxu0 0.0
        %296 = vmatprep.subr.mxu0 0.0
        %297 = vmatpush2.msra.mxu0 0.0
        %298 = vmatprep.subr.mxu0 0.0
        %299 = vmatpush2.msra.mxu0 0.0
        %300 = vmatprep.subr.mxu0 0.0
        %301 = vmatpush2.msra.mxu0 0.0
        %302 = vmatprep.subr.mxu0 0.0
        %303 = vmatpush2.msra.mxu0 0.0
        %304 = vmatprep.subr.mxu0 0.0
        %305 = vmatpush2.msra.mxu0 0.0
        %306 = vmatprep.subr.mxu0 0.0
        %307 = vmatpush2.msra.mxu0 0.0
        %308 = vmatprep.mubr.f32.mxu0 0.0
        %309 = vmatmul.mubr.f32.gmra.mxu0 %v242
        %v310 = vpop.f32.mrf.mxu0
        %v311 = vadd.f32 0.0, %v310
        %v312 = vpop.f32.mrf.mxu0
        %v313 = vadd.f32 0.0, %v312
        %314 = vdwg.mxu0
        %v315 = vmul.f32 %v311, 0.17677669
        %317 = vrot.lane.b32.xlu0 %v311, 64
        %v318 = vpop.permute.xlu0 %317
        %v320 = vsel %vm240, %v315, 0
        %v322 = vsel %vm240, %v318, 0
        %324 = vmatprep.subr.mxu0 0.0
        %325 = vmatpush1.xpose.msra.mxu0 0.0
        %326 = vmatprep.subr.mxu0 0.0
        %327 = vmatpush1.xpose.msra.mxu0 0.0
        %328 = vmatprep.subr.mxu0 0.0
        %329 = vmatpush1.xpose.msra.mxu0 0.0
        %330 = vmatprep.subr.mxu0 0.0
        %331 = vmatpush1.xpose.msra.mxu0 0.0
        %332 = vmatprep.subr.mxu0 0.0
        %333 = vmatpush1.xpose.msra.mxu0 0.0
        %334 = vmatprep.subr.mxu0 0.0
        %335 = vmatpush1.xpose.msra.mxu0 0.0
        %336 = vmatprep.subr.mxu0 0.0
        %337 = vmatpush1.xpose.msra.mxu0 0.0
        %338 = vmatprep.subr.mxu0 0.0
        %339 = vmatpush1.xpose.msra.mxu0 0.0
        %340 = vmatprep.subr.mxu0 0.0
        %341 = vmatpush1.xpose.msra.mxu0 0.0
        %342 = vmatprep.subr.mxu0 0.0
        %343 = vmatpush1.xpose.msra.mxu0 0.0
        %344 = vmatprep.subr.mxu0 0.0
        %345 = vmatpush1.xpose.msra.mxu0 0.0
        %346 = vmatprep.subr.mxu0 0.0
        %347 = vmatpush1.xpose.msra.mxu0 0.0
        %348 = vmatprep.subr.mxu0 0.0
        %349 = vmatpush1.xpose.msra.mxu0 0.0
        %350 = vmatprep.subr.mxu0 0.0
        %351 = vmatpush1.xpose.msra.mxu0 0.0
        %352 = vmatprep.subr.mxu0 0.0
        %353 = vmatpush1.xpose.msra.mxu0 0.0
        %354 = vmatprep.subr.mxu0 0.0
        %355 = vmatpush1.xpose.msra.mxu0 %v322
        %356 = vmatprep.subr.mxu0 0.0
        %357 = vmatpush2.xpose.msra.mxu0 0.0
        %358 = vmatprep.subr.mxu0 0.0
        %359 = vmatpush2.xpose.msra.mxu0 0.0
        %360 = vmatprep.subr.mxu0 0.0
        %361 = vmatpush2.xpose.msra.mxu0 0.0
        %362 = vmatprep.subr.mxu0 0.0
        %363 = vmatpush2.xpose.msra.mxu0 0.0
        %364 = vmatprep.subr.mxu0 0.0
        %365 = vmatpush2.xpose.msra.mxu0 0.0
        %366 = vmatprep.subr.mxu0 0.0
        %367 = vmatpush2.xpose.msra.mxu0 0.0
        %368 = vmatprep.subr.mxu0 0.0
        %369 = vmatpush2.xpose.msra.mxu0 0.0
        %370 = vmatprep.subr.mxu0 0.0
        %371 = vmatpush2.xpose.msra.mxu0 0.0
        %372 = vmatprep.subr.mxu0 0.0
        %373 = vmatpush2.xpose.msra.mxu0 0.0
        %374 = vmatprep.subr.mxu0 0.0
        %375 = vmatpush2.xpose.msra.mxu0 0.0
        %376 = vmatprep.subr.mxu0 0.0
        %377 = vmatpush2.xpose.msra.mxu0 0.0
        %378 = vmatprep.subr.mxu0 0.0
        %379 = vmatpush2.xpose.msra.mxu0 0.0
        %380 = vmatprep.subr.mxu0 0.0
        %381 = vmatpush2.xpose.msra.mxu0 0.0
        %382 = vmatprep.subr.mxu0 0.0
        %383 = vmatpush2.xpose.msra.mxu0 0.0
        %384 = vmatprep.subr.mxu0 0.0
        %385 = vmatpush2.xpose.msra.mxu0 0.0
        %386 = vmatprep.subr.mxu0 0.0
        %387 = vmatpush2.xpose.msra.mxu0 0.0
        %388 = vmatprep.mubr.f32.mxu0 0.0
        %389 = vmatmul.mubr.f32.gmra.mxu0 %v320
        %v390 = vpop.f32.mrf.mxu0
        %v391 = vadd.f32 0.0, %v390
        %v392 = vpop.f32.mrf.mxu0
        %393 = vdwg.mxu0
        %vm394 = vcmask 64512
        %v395 = vsel %vm394, %v391, -inf
        %396 = vmax.xlane.f32.xlu0 %v395
        %v397 = vpop.xlane.xlu0 %396
        %v398 = vsub.f32 %v391, %v397
        %v399 = vmul.f32 %v398, 1.442695
        %v400 = vpow.pop %v399
        %v401 = vsel %vm394, %v400, 0.0
        %402 = vadd.xlane.f32.xlu0 %v401
        %v403 = vpop.xlane.xlu0 %402
        %v404 = vrcp.pop %v403
        %v405 = vmul.f32 %v400, %v404
        %406 = vst.msk [vmem:[%s226] sm:$0xff] %vm394, %v405
        %v408 = vsel %vm394, %v405, 0
        %410 = vmatprep.subr.mxu0 0.0
        %411 = vmatpush1.msra.mxu0 0.0
        %412 = vmatprep.subr.mxu0 0.0
        %413 = vmatpush1.msra.mxu0 0.0
        %414 = vmatprep.subr.mxu0 0.0
        %415 = vmatpush1.msra.mxu0 0.0
        %416 = vmatprep.subr.mxu0 0.0
        %417 = vmatpush1.msra.mxu0 0.0
        %418 = vmatprep.subr.mxu0 0.0
        %419 = vmatpush1.msra.mxu0 0.0
        %420 = vmatprep.subr.mxu0 0.0
        %421 = vmatpush1.msra.mxu0 0.0
        %422 = vmatprep.subr.mxu0 0.0
        %423 = vmatpush1.msra.mxu0 0.0
        %424 = vmatprep.subr.mxu0 0.0
        %425 = vmatpush1.msra.mxu0 0.0
        %426 = vmatprep.subr.mxu0 0.0
        %427 = vmatpush1.msra.mxu0 0.0
        %428 = vmatprep.subr.mxu0 0.0
        %429 = vmatpush1.msra.mxu0 0.0
        %430 = vmatprep.subr.mxu0 0.0
        %431 = vmatpush1.msra.mxu0 0.0
        %432 = vmatprep.subr.mxu0 0.0
        %433 = vmatpush1.msra.mxu0 0.0
        %434 = vmatprep.subr.mxu0 0.0
        %435 = vmatpush1.msra.mxu0 0.0
        %436 = vmatprep.subr.mxu0 0.0
        %437 = vmatpush1.msra.mxu0 0.0
        %438 = vmatprep.subr.mxu0 0.0
        %439 = vmatpush1.msra.mxu0 0.0
        %440 = vmatprep.subr.mxu0 0.0
        %441 = vmatpush1.msra.mxu0 %v313
        %442 = vmatprep.subr.mxu0 0.0
        %443 = vmatpush2.msra.mxu0 0.0
        %444 = vmatprep.subr.mxu0 0.0
        %445 = vmatpush2.msra.mxu0 0.0
        %446 = vmatprep.subr.mxu0 0.0
        %447 = vmatpush2.msra.mxu0 0.0
        %448 = vmatprep.subr.mxu0 0.0
        %449 = vmatpush2.msra.mxu0 0.0
        %450 = vmatprep.subr.mxu0 0.0
        %451 = vmatpush2.msra.mxu0 0.0
        %452 = vmatprep.subr.mxu0 0.0
        %453 = vmatpush2.msra.mxu0 0.0
        %454 = vmatprep.subr.mxu0 0.0
        %455 = vmatpush2.msra.mxu0 0.0
        %456 = vmatprep.subr.mxu0 0.0
        %457 = vmatpush2.msra.mxu0 0.0
        %458 = vmatprep.subr.mxu0 0.0
        %459 = vmatpush2.msra.mxu0 0.0
        %460 = vmatprep.subr.mxu0 0.0
        %461 = vmatpush2.msra.mxu0 0.0
        %462 = vmatprep.subr.mxu0 0.0
        %463 = vmatpush2.msra.mxu0 0.0
        %464 = vmatprep.subr.mxu0 0.0
        %465 = vmatpush2.msra.mxu0 0.0
        %466 = vmatprep.subr.mxu0 0.0
        %467 = vmatpush2.msra.mxu0 0.0
        %468 = vmatprep.subr.mxu0 0.0
        %469 = vmatpush2.msra.mxu0 0.0
        %470 = vmatprep.subr.mxu0 0.0
        %471 = vmatpush2.msra.mxu0 0.0
        %472 = vmatprep.subr.mxu0 0.0
        %473 = vmatpush2.msra.mxu0 0.0
        %474 = vmatprep.mubr.f32.mxu0 0.0
        %475 = vmatmul.mubr.f32.gmra.mxu0 %v408
        %v476 = vpop.f32.mrf.mxu0
        %v477 = vadd.f32 0.0, %v476
        %v478 = vpop.f32.mrf.mxu0
        %479 = vdwg.mxu0
        %480 = vrot.lane.b32.xlu0 %v315, 96
        %v481 = vpop.permute.xlu0 %480
        %482 = vrot.lane.b32.xlu0 %v311, 32
        %v483 = vpop.permute.xlu0 %482
        %v484 = vsel %vm240, %v481, 0
        %v486 = vsel %vm240, %v483, 0
        %488 = vmatprep.subr.mxu0 0.0
        %489 = vmatpush1.xpose.msra.mxu0 0.0
        %490 = vmatprep.subr.mxu0 0.0
        %491 = vmatpush1.xpose.msra.mxu0 0.0
        %492 = vmatprep.subr.mxu0 0.0
        %493 = vmatpush1.xpose.msra.mxu0 0.0
        %494 = vmatprep.subr.mxu0 0.0
        %495 = vmatpush1.xpose.msra.mxu0 0.0
        %496 = vmatprep.subr.mxu0 0.0
        %497 = vmatpush1.xpose.msra.mxu0 0.0
        %498 = vmatprep.subr.mxu0 0.0
        %499 = vmatpush1.xpose.msra.mxu0 0.0
        %500 = vmatprep.subr.mxu0 0.0
        %501 = vmatpush1.xpose.msra.mxu0 0.0
        %502 = vmatprep.subr.mxu0 0.0
        %503 = vmatpush1.xpose.msra.mxu0 0.0
        %504 = vmatprep.subr.mxu0 0.0
        %505 = vmatpush1.xpose.msra.mxu0 0.0
        %506 = vmatprep.subr.mxu0 0.0
        %507 = vmatpush1.xpose.msra.mxu0 0.0
        %508 = vmatprep.subr.mxu0 0.0
        %509 = vmatpush1.xpose.msra.mxu0 0.0
        %510 = vmatprep.subr.mxu0 0.0
        %511 = vmatpush1.xpose.msra.mxu0 0.0
        %512 = vmatprep.subr.mxu0 0.0
        %513 = vmatpush1.xpose.msra.mxu0 0.0
        %514 = vmatprep.subr.mxu0 0.0
        %515 = vmatpush1.xpose.msra.mxu0 0.0
        %516 = vmatprep.subr.mxu0 0.0
        %517 = vmatpush1.xpose.msra.mxu0 0.0
        %518 = vmatprep.subr.mxu0 0.0
        %519 = vmatpush1.xpose.msra.mxu0 %v486
        %520 = vmatprep.subr.mxu0 0.0
        %521 = vmatpush2.xpose.msra.mxu0 0.0
        %522 = vmatprep.subr.mxu0 0.0
        %523 = vmatpush2.xpose.msra.mxu0 0.0
        %524 = vmatprep.subr.mxu0 0.0
        %525 = vmatpush2.xpose.msra.mxu0 0.0
        %526 = vmatprep.subr.mxu0 0.0
        %527 = vmatpush2.xpose.msra.mxu0 0.0
        %528 = vmatprep.subr.mxu0 0.0
        %529 = vmatpush2.xpose.msra.mxu0 0.0
        %530 = vmatprep.subr.mxu0 0.0
        %531 = vmatpush2.xpose.msra.mxu0 0.0
        %532 = vmatprep.subr.mxu0 0.0
        %533 = vmatpush2.xpose.msra.mxu0 0.0
        %534 = vmatprep.subr.mxu0 0.0
        %535 = vmatpush2.xpose.msra.mxu0 0.0
        %536 = vmatprep.subr.mxu0 0.0
        %537 = vmatpush2.xpose.msra.mxu0 0.0
        %538 = vmatprep.subr.mxu0 0.0
        %539 = vmatpush2.xpose.msra.mxu0 0.0
        %540 = vmatprep.subr.mxu0 0.0
        %541 = vmatpush2.xpose.msra.mxu0 0.0
        %542 = vmatprep.subr.mxu0 0.0
        %543 = vmatpush2.xpose.msra.mxu0 0.0
        %544 = vmatprep.subr.mxu0 0.0
        %545 = vmatpush2.xpose.msra.mxu0 0.0
        %546 = vmatprep.subr.mxu0 0.0
        %547 = vmatpush2.xpose.msra.mxu0 0.0
        %548 = vmatprep.subr.mxu0 0.0
        %549 = vmatpush2.xpose.msra.mxu0 0.0
        %550 = vmatprep.subr.mxu0 0.0
        %551 = vmatpush2.xpose.msra.mxu0 0.0
        %552 = vmatprep.mubr.f32.mxu0 0.0
        %553 = vmatmul.mubr.f32.gmra.mxu0 %v484
        %v554 = vpop.f32.mrf.mxu0
        %v555 = vadd.f32 0.0, %v554
        %v556 = vpop.f32.mrf.mxu0
        %557 = vdwg.mxu0
        %v558 = vsel %vm394, %v555, -inf
        %559 = vmax.xlane.f32.xlu0 %v558
        %v560 = vpop.xlane.xlu0 %559
        %v561 = vsub.f32 %v555, %v560
        %v562 = vmul.f32 %v561, 1.442695
        %v563 = vpow.pop %v562
        %v564 = vsel %vm394, %v563, 0.0
        %565 = vadd.xlane.f32.xlu0 %v564
        %v566 = vpop.xlane.xlu0 %565
        %v567 = vrcp.pop %v566
        %v568 = vmul.f32 %v563, %v567
        %s569 = scalar_lea.vmem %s226, 8 [#allocation4]
        %570 = vst.msk [vmem:[%s569] sm:$0xff] %vm394, %v568
        %572 = vrot.lane.b32.xlu0 %v313, 96
        %v573 = vpop.permute.xlu0 %572
        %v576 = vsel %vm394, %v568, 0
        %578 = vmatprep.subr.mxu0 0.0
        %579 = vmatpush1.msra.mxu0 0.0
        %580 = vmatprep.subr.mxu0 0.0
        %581 = vmatpush1.msra.mxu0 0.0
        %582 = vmatprep.subr.mxu0 0.0
        %583 = vmatpush1.msra.mxu0 0.0
        %584 = vmatprep.subr.mxu0 0.0
        %585 = vmatpush1.msra.mxu0 0.0
        %586 = vmatprep.subr.mxu0 0.0
        %587 = vmatpush1.msra.mxu0 0.0
        %588 = vmatprep.subr.mxu0 0.0
        %589 = vmatpush1.msra.mxu0 0.0
        %590 = vmatprep.subr.mxu0 0.0
        %591 = vmatpush1.msra.mxu0 0.0
        %592 = vmatprep.subr.mxu0 0.0
        %593 = vmatpush1.msra.mxu0 0.0
        %594 = vmatprep.subr.mxu0 0.0
        %595 = vmatpush1.msra.mxu0 0.0
        %596 = vmatprep.subr.mxu0 0.0
        %597 = vmatpush1.msra.mxu0 0.0
        %598 = vmatprep.subr.mxu0 0.0
        %599 = vmatpush1.msra.mxu0 0.0
        %600 = vmatprep.subr.mxu0 0.0
        %601 = vmatpush1.msra.mxu0 0.0
        %602 = vmatprep.subr.mxu0 0.0
        %603 = vmatpush1.msra.mxu0 0.0
        %604 = vmatprep.subr.mxu0 0.0
        %605 = vmatpush1.msra.mxu0 0.0
        %606 = vmatprep.subr.mxu0 0.0
        %607 = vmatpush1.msra.mxu0 0.0
        %608 = vmatprep.subr.mxu0 0.0
        %609 = vmatpush1.msra.mxu0 %v573
        %610 = vmatprep.subr.mxu0 0.0
        %611 = vmatpush2.msra.mxu0 0.0
        %612 = vmatprep.subr.mxu0 0.0
        %613 = vmatpush2.msra.mxu0 0.0
        %614 = vmatprep.subr.mxu0 0.0
        %615 = vmatpush2.msra.mxu0 0.0
        %616 = vmatprep.subr.mxu0 0.0
        %617 = vmatpush2.msra.mxu0 0.0
        %618 = vmatprep.subr.mxu0 0.0
        %619 = vmatpush2.msra.mxu0 0.0
        %620 = vmatprep.subr.mxu0 0.0
        %621 = vmatpush2.msra.mxu0 0.0
        %622 = vmatprep.subr.mxu0 0.0
        %623 = vmatpush2.msra.mxu0 0.0
        %624 = vmatprep.subr.mxu0 0.0
        %625 = vmatpush2.msra.mxu0 0.0
        %626 = vmatprep.subr.mxu0 0.0
        %627 = vmatpush2.msra.mxu0 0.0
        %628 = vmatprep.subr.mxu0 0.0
        %629 = vmatpush2.msra.mxu0 0.0
        %630 = vmatprep.subr.mxu0 0.0
        %631 = vmatpush2.msra.mxu0 0.0
        %632 = vmatprep.subr.mxu0 0.0
        %633 = vmatpush2.msra.mxu0 0.0
        %634 = vmatprep.subr.mxu0 0.0
        %635 = vmatpush2.msra.mxu0 0.0
        %636 = vmatprep.subr.mxu0 0.0
        %637 = vmatpush2.msra.mxu0 0.0
        %638 = vmatprep.subr.mxu0 0.0
        %639 = vmatpush2.msra.mxu0 0.0
        %640 = vmatprep.subr.mxu0 0.0
        %641 = vmatpush2.msra.mxu0 0.0
        %642 = vmatprep.mubr.f32.mxu0 0.0
        %643 = vmatmul.mubr.f32.gmra.mxu0 %v576
        %v644 = vpop.f32.mrf.mxu0
        %v645 = vadd.f32 0.0, %v644
        %v646 = vpop.f32.mrf.mxu0
        %647 = vdwg.mxu0
        %649 = vrot.lane.b32.xlu0 %v645, 32
        %v650 = vpop.permute.xlu0 %649
        %v652 = vsel %vm240, %v477, %v650
        %v653 = vld [vmem:[%s2] sm:$0xff]
        %v654 = vld [vmem:[%s2 + $0x8] sm:$0xff]
        %v655 = vld [vmem:[%s2 + $0x10] sm:$0xff]
        %v656 = vld [vmem:[%s2 + $0x18] sm:$0xff]
        %v657 = vld [vmem:[%s2 + $0x20] sm:$0xff]
        %v658 = vld [vmem:[%s2 + $0x28] sm:$0xff]
        %v659 = vld [vmem:[%s2 + $0x30] sm:$0xff]
        %v660 = vld [vmem:[%s2 + $0x38] sm:$0xff]
        %v661 = vld [vmem:[%s3] sm:$0x1]
        %v663 = vlaneseq
        %v664 = vshrl.u32 %v663, 7
        %v665 = vsub.s32 0, %v664
        %v666 = vrot.slane %v661, %v665
        %vm668 = vcmask 523264
        %v670 = vsel %vm668, %v652, 0
        %672 = vmatprep.subr.mxu0 0.0
        %673 = vmatpush1.msra.mxu0 0.0
        %674 = vmatprep.subr.mxu0 0.0
        %675 = vmatpush1.msra.mxu0 0.0
        %676 = vmatprep.subr.mxu0 0.0
        %677 = vmatpush1.msra.mxu0 0.0
        %678 = vmatprep.subr.mxu0 0.0
        %679 = vmatpush1.msra.mxu0 0.0
        %680 = vmatprep.subr.mxu0 0.0
        %681 = vmatpush1.msra.mxu0 0.0
        %682 = vmatprep.subr.mxu0 0.0
        %683 = vmatpush1.msra.mxu0 0.0
        %684 = vmatprep.subr.mxu0 0.0
        %685 = vmatpush1.msra.mxu0 0.0
        %686 = vmatprep.subr.mxu0 0.0
        %687 = vmatpush1.msra.mxu0 0.0
        %688 = vmatprep.subr.mxu0 0.0
        %689 = vmatpush1.msra.mxu0 %v660
        %690 = vmatprep.subr.mxu0 0.0
        %691 = vmatpush1.msra.mxu0 %v659
        %692 = vmatprep.subr.mxu0 0.0
        %693 = vmatpush1.msra.mxu0 %v658
        %694 = vmatprep.subr.mxu0 0.0
        %695 = vmatpush1.msra.mxu0 %v657
        %696 = vmatprep.subr.mxu0 0.0
        %697 = vmatpush1.msra.mxu0 %v656
        %698 = vmatprep.subr.mxu0 0.0
        %699 = vmatpush1.msra.mxu0 %v655
        %700 = vmatprep.subr.mxu0 0.0
        %701 = vmatpush1.msra.mxu0 %v654
        %702 = vmatprep.subr.mxu0 0.0
        %703 = vmatpush1.msra.mxu0 %v653
        %704 = vmatprep.subr.mxu0 0.0
        %705 = vmatpush2.msra.mxu0 0.0
        %706 = vmatprep.subr.mxu0 0.0
        %707 = vmatpush2.msra.mxu0 0.0
        %708 = vmatprep.subr.mxu0 0.0
        %709 = vmatpush2.msra.mxu0 0.0
        %710 = vmatprep.subr.mxu0 0.0
        %711 = vmatpush2.msra.mxu0 0.0
        %712 = vmatprep.subr.mxu0 0.0
        %713 = vmatpush2.msra.mxu0 0.0
        %714 = vmatprep.subr.mxu0 0.0
        %715 = vmatpush2.msra.mxu0 0.0
        %716 = vmatprep.subr.mxu0 0.0
        %717 = vmatpush2.msra.mxu0 0.0
        %718 = vmatprep.subr.mxu0 0.0
        %719 = vmatpush2.msra.mxu0 0.0
        %720 = vmatprep.subr.mxu0 0.0
        %721 = vmatpush2.msra.mxu0 0.0
        %722 = vmatprep.subr.mxu0 0.0
        %723 = vmatpush2.msra.mxu0 0.0
        %724 = vmatprep.subr.mxu0 0.0
        %725 = vmatpush2.msra.mxu0 0.0
        %726 = vmatprep.subr.mxu0 0.0
        %727 = vmatpush2.msra.mxu0 0.0
        %728 = vmatprep.subr.mxu0 0.0
        %729 = vmatpush2.msra.mxu0 0.0
        %730 = vmatprep.subr.mxu0 0.0
        %731 = vmatpush2.msra.mxu0 0.0
        %732 = vmatprep.subr.mxu0 0.0
        %733 = vmatpush2.msra.mxu0 0.0
        %734 = vmatprep.subr.mxu0 0.0
        %735 = vmatpush2.msra.mxu0 0.0
        %736 = vmatprep.mubr.f32.mxu0 0.0
        %737 = vmatmul.mubr.f32.gmra.mxu0 %v670
        %v738 = vpop.f32.mrf.mxu0
        %v739 = vadd.f32 %v666, %v738
        %v740 = vpop.f32.mrf.mxu0
        %741 = vdwg.mxu0
        %742 = vst.msk [vmem:[%s219] sm:$0xff] %vm240, %v739
        %s743 = sand.u32 %s120, 1
        %s744 = scalar_lea.sflag [#allocation3], %s743
        %s745 = sand.u32 %s120, 1
        %s746 = smul.addr %s745, 8
        %s747 = scalar_lea.vmem [#allocation2], %s746
        %s748 = sand.u32 %s146, 1
        %s749 = scalar_lea.sflag [#allocation5], %s748
        %s750 = sand.u32 %s146, 1
        %s751 = smul.addr %s750, 16
        %s752 = scalar_lea.vmem [#allocation4], %s751
        // Predicated region
        $region37: #{tpu_custom_call.1} parent=35 // pred_check
          %p753 = pneg %p130
        $region38: #{tpu_custom_call.1} parent=35 // pred_check_branch
          %755 = sbr.rel (%p753) target = $region40
        $region39: #{tpu_custom_call.1} parent=35 // pred_region
          %s757 = ssub.s32 128, 128
          %758 = vsyncadd %s744, %s757
          %s759 = smul.addr %s23, 128
          %s760 = scalar_lea.hbm %s4, %s759
          %s762 = sshll.u32 %s747, 4
          %s763 = int_to_ptr.vmem [resolvable:$true] %s762
          %765 = dma.vmem_to_hbm [thread:$0]  %s763, 128, %s760, %s744
        $region40: #{tpu_custom_call.1} parent=35 // pred_fallthru
          _
        // Predicated region
        $region41: #{tpu_custom_call.1} parent=35 // pred_check
          %p766 = pneg %p156
        $region42: #{tpu_custom_call.1} parent=35 // pred_check_branch
          %768 = sbr.rel (%p766) target = $region44
        $region43: #{tpu_custom_call.1} parent=35 // pred_region
          %s770 = ssub.s32 256, 256
          %771 = vsyncadd %s749, %s770
          %s772 = smul.addr %s23, 2
          %s773 = smul.addr %s772, 128
          %s774 = scalar_lea.hbm %s5, %s773
          %s775 = sshll.u32 %s752, 4
          %s776 = int_to_ptr.vmem [resolvable:$true] %s775
          %781 = dma.vmem_to_hbm [thread:$0]  %s776, 256, %s774, %s749, 128, 128, 8
        $region44: #{tpu_custom_call.1} parent=35 // pred_fallthru
          _
      $region36: #{tpu_custom_call.1} parent=5 // pred_fallthru
        _
      %p782 = scmp.le.s32.totalorder 2, %s18
      // Predicated region
      $region45: #{tpu_custom_call.1} parent=5 // pred_check
        %p783 = pneg %p782
      $region46: #{tpu_custom_call.1} parent=5 // pred_check_branch
        %785 = sbr.rel (%p783) target = $region48
      $region47: #{tpu_custom_call.1} parent=5 // pred_region
        %s786 = ssub.s32 %s18, 2
        // Predicated region
        $region49: #{tpu_custom_call.1} parent=47 // pred_check
          %p787 = pneg %p136
        $region50: #{tpu_custom_call.1} parent=47 // pred_check_branch
          %789 = sbr.rel (%p787) target = $region52
        $region51: #{tpu_custom_call.1} parent=47 // pred_region
          %s790 = sand.u32 %s121, 1
          %s791 = scalar_lea.sflag [#allocation3], %s790
          %s792 = sand.u32 %s121, 1
          %s793 = smul.addr %s792, 8
          %s794 = scalar_lea.vmem [#allocation2], %s793
          %795 = dma.done %s791, 128
        $region52: #{tpu_custom_call.1} parent=47 // pred_fallthru
          _
        // Predicated region
        $region53: #{tpu_custom_call.1} parent=47 // pred_check
          %p796 = pneg %p162
        $region54: #{tpu_custom_call.1} parent=47 // pred_check_branch
          %798 = sbr.rel (%p796) target = $region56
        $region55: #{tpu_custom_call.1} parent=47 // pred_region
          %s799 = sand.u32 %s147, 1
          %s800 = scalar_lea.sflag [#allocation5], %s799
          %s801 = sand.u32 %s147, 1
          %s802 = smul.addr %s801, 16
          %s803 = scalar_lea.vmem [#allocation4], %s802
          %804 = dma.done %s800, 256
        $region56: #{tpu_custom_call.1} parent=47 // pred_fallthru
          _
      $region48: #{tpu_custom_call.1} parent=5 // pred_fallthru
        _
    $region6: #{tpu_custom_call.1} parent=1 // loop_footer
      %s22 = sadd.s32 1, %s18
    $region7: #{tpu_custom_call.1} parent=1 // loop_footer_branch
      %17 = sbr.rel target = $region3
    $region8: #{tpu_custom_call.1} parent=1 // loop_exit
      _
    %805 = vsyncpa [#allocation3], 1
    %s806 = scalar_lea.sflag [#allocation3], 1
    %807 = vsyncpa %s806, 1
    %808 = vsyncpa [#allocation5], 1
    %s809 = scalar_lea.sflag [#allocation5], 1
    %810 = vsyncpa %s809, 1

</llo_original>
